<compile_context>
chip_gen: v7x
topology: tpu7x:2x2x1
jax: 0.10.0
libtpu: 0.0.40
codegen_flags: <defaults>
</compile_context>

<pallas_src>
import jax
import jax.numpy as jnp
from jax.experimental import pallas as pl
from jax.experimental.pallas import tpu as pltpu

FEATURES = 10
SUBLANE = 8           # batch-tile granularity (sublane multiple)
GRIDLESS_MAX = 1024   # up to this many rows: single full-array VMEM launch
BATCH_TILE = 4096     # max rows per grid step on the tiled path (narrow blocks)


def mlp_folded_kernel(x_ref, w_ref, o_ref):
    # Single MXU matmul: (TILE, 10) @ (10, 10) -> (TILE, 10).
    o_ref[...] = jnp.dot(
        x_ref[...], w_ref[...], preferred_element_type=jnp.float32
    ).astype(o_ref.dtype)


def _round_up(n, m):
    return ((n + m - 1) // m) * m


def my_model_forward(x, w1, w2, w3, w4):
    """Forward pass of MyModel: (((x @ W1.T) @ W2.T) @ W3.T) @ W4.T."""
    B, F = x.shape
    assert F == FEATURES

    # Fold the linear chain once per call (four 10x10 matmuls — negligible).
    # Oriented (in, out) so the kernel needs no transpose.
    wc = w1.T @ w2.T @ w3.T @ w4.T                      # (F, F)

    vmem = pltpu.MemorySpace.VMEM

    if B <= GRIDLESS_MAX:
        # Small batch: gridless launch, whole (B, 10) and (10, 10) arrays in
        # VMEM.  No padding, no grid machinery.
        out = pl.pallas_call(
            mlp_folded_kernel,
            out_shape=jax.ShapeDtypeStruct((B, F), x.dtype),
            in_specs=[
                pl.BlockSpec(memory_space=vmem),
                pl.BlockSpec(memory_space=vmem),
            ],
            out_specs=pl.BlockSpec(memory_space=vmem),
        )(x, wc)
        return out

    # Tiled path: narrow (TILE, 10) blocks, weight resident, batch axis
    # sharded across cores.  Choose the tile so there are always >=2 grid
    # steps (both v7x TensorCores busy), capped at BATCH_TILE rows.
    tile = min(BATCH_TILE, _round_up(pl.cdiv(B, 2), SUBLANE))
    Bp = _round_up(B, tile)
    if Bp != B:
        # Single fused pad directly from x (only extra rows are zero-filled).
        x = jnp.zeros((Bp, F), x.dtype).at[:B, :].set(x)

    out_p = pl.pallas_call(
        mlp_folded_kernel,
        out_shape=jax.ShapeDtypeStruct((Bp, F), x.dtype),
        grid=(Bp // tile,),
        in_specs=[
            pl.BlockSpec((tile, F), lambda i: (i, 0)),
            pl.BlockSpec((F, F), lambda i: (0, 0)),
        ],
        out_specs=pl.BlockSpec((tile, F), lambda i: (i, 0)),
        compiler_params=pltpu.CompilerParams(
            dimension_semantics=("parallel",)),
    )(x, wc)
    return out_p[:B, :]


def reference_forward(x, w1, w2, w3, w4):
    h = x
    for w in (w1, w2, w3, w4):
        h = h @ w.T
    return h


if __name__ == "__main__":
    key = jax.random.PRNGKey(0)
    kx, k1, k2, k3, k4 = jax.random.split(key, 5)

    # Deterministic parameter init (uniform, like PyTorch's default 1/sqrt(in)).
    bound = 1.0 / (FEATURES ** 0.5)
    w1 = jax.random.uniform(k1, (FEATURES, FEATURES), jnp.float32, -bound, bound)
    w2 = jax.random.uniform(k2, (FEATURES, FEATURES), jnp.float32, -bound, bound)
    w3 = jax.random.uniform(k3, (FEATURES, FEATURES), jnp.float32, -bound, bound)
    w4 = jax.random.uniform(k4, (FEATURES, FEATURES), jnp.float32, -bound, bound)

    fwd = jax.jit(my_model_forward)

    # Small batch: exercises the gridless path.
    B_small = 8
    x_small = jax.random.normal(kx, (B_small, FEATURES), dtype=jnp.float32)
    out_small = fwd(x_small, w1, w2, w3, w4)
    jax.block_until_ready(out_small)
    ref_small = reference_forward(x_small, w1, w2, w3, w4)
    assert out_small.shape == (B_small, FEATURES)
    assert jnp.allclose(out_small, ref_small, atol=1e-4, rtol=1e-4), \
        "small-batch mismatch vs reference"

    # Modest larger batch: exercises the tiled (grid) path with >=2 steps.
    B_big = 2064
    x_big = jax.random.normal(kx, (B_big, FEATURES), dtype=jnp.float32)
    out_big = fwd(x_big, w1, w2, w3, w4)
    jax.block_until_ready(out_big)
    ref_big = reference_forward(x_big, w1, w2, w3, w4)
    assert out_big.shape == (B_big, FEATURES)
    assert jnp.allclose(out_big, ref_big, atol=1e-4, rtol=1e-4), \
        "tiled-path mismatch vs reference"

    print("KERNEL_OK")
</pallas_src>

<mosaic_0001>
module attributes {stable_mosaic.version = 11 : i64} {
  func.func @mlp_folded_kernel(%arg0: memref<8x10xf32, #tpu.memory_space<vmem>>, %arg1: memref<10x10xf32, #tpu.memory_space<vmem>>, %arg2: memref<8x10xf32, #tpu.memory_space<vmem>>) attributes {dimension_semantics = [], scalar_prefetch = 0 : i64, scratch_operands = 0 : i64, tpu.core_type = #tpu.core_type<tc>} {
    %c0 = arith.constant 0 : index
    %c0_0 = arith.constant 0 : index
    %0 = vector.load %arg0[%c0, %c0_0] : memref<8x10xf32, #tpu.memory_space<vmem>>, vector<8x10xf32>
    %c0_1 = arith.constant 0 : index
    %c0_2 = arith.constant 0 : index
    %1 = vector.load %arg1[%c0_1, %c0_2] : memref<10x10xf32, #tpu.memory_space<vmem>>, vector<10x10xf32>
    %cst = arith.constant dense<0.000000e+00> : vector<8x10xf32>
    %2 = tpu.matmul %0, %1, %cst {dimension_numbers = #tpu.dot_dimension_numbers<[1], [0], [0], [1], [0, 0, 1, 1], [], []>} : vector<8x10xf32>, vector<10x10xf32>, vector<8x10xf32> -> vector<8x10xf32>
    %c0_3 = arith.constant 0 : index
    %c0_4 = arith.constant 0 : index
    %3 = vector.load %arg2[%c0_3, %c0_4] : memref<8x10xf32, #tpu.memory_space<vmem>>, vector<8x10xf32>
    tpu.vector_store %arg2[%c0_3, %c0_4], %2 {strides = array<i32>} : memref<8x10xf32, #tpu.memory_space<vmem>>, vector<8x10xf32>,
    return
  }
}

</mosaic_0001>

<llo_original>
// kernel: my_model_forward.1
$region0: #{my_model_forward.1}
  #allocation0 [shape = 'u32[]', space=smem, size = 0x4, offset = 0x4, fixed_abs, tag = 'smem constant byte address 0x4 - core index']
  #allocation1 [shape = 'u32[144,128]{1,0:T(1,128)}', space=vmem, size = 0x12000, scoped, tag = 'internal scratch']
  %s0 = inlined_call_operand.vmem [shape: f32[8,10], index: 0, kind: input, shape index: {}]
  %s1 = inlined_call_operand.vmem [shape: f32[10,10], index: 1, kind: input, shape index: {}]
  %s2 = inlined_call_operand.hbm [shape: f32[8,10], index: 2, kind: output, shape index: {}]
  %s3 = sld [smem:[#allocation0]]
  $region18: #{my_model_forward.1} parent=0
    _
  %s5 = ssub.s32 1, %s3
  %s6 = scalar_select 0, %s5, %s3
  $region1: #{my_model_forward.1} parent=0
    #allocation2 [shape = 'u8[4096]{0}', space=vmem, size = 0x1000, scoped, tag = 'output window, operand 0, single buffered']
    #allocation3 [shape = 's32[1]{0}', space=sflag, size = 0x4, scoped, tag = 'scoped memory for my_model_forward.1']
    %7 = vsyncpa [#allocation3], 0
    // Predicated region
    $region2: #{my_model_forward.1} parent=1 // pred_check
      _
    $region3: #{my_model_forward.1} parent=1 // pred_check_branch
      %9 = sbr.rel (0) target = $region5
    $region4: #{my_model_forward.1} parent=1 // pred_region
      _
    $region5: #{my_model_forward.1} parent=1 // pred_fallthru
      _
    // Predicated region
    $region6: #{my_model_forward.1} parent=1 // pred_check
      _
    $region7: #{my_model_forward.1} parent=1 // pred_check_branch
      %11 = sbr.rel (0) target = $region9
    $region8: #{my_model_forward.1} parent=1 // pred_region
      _
    $region9: #{my_model_forward.1} parent=1 // pred_fallthru
      _
    %v12 = vld [vmem:[%s0] sm:$0xff]
    %v13 = vld [vmem:[%s1] sm:$0xff]
    %v14 = vld [vmem:[%s1 + $0x8] sm:$0x3]
    %vm15 = vcmask 80896
    %v17 = vsel %vm15, %v12, 0
    %vm19 = vcmask 1041408
    %v21 = vsel %vm19, %v14, 0
    %23 = vmatprep.subr.mxu0 0.0
    %24 = vmatpush1.msra.mxu0 %v13
    %25 = vmatprep.subr.mxu0 0.0
    %26 = vmatpush1.msra.mxu0 %v21
    %27 = vmatprep.subr.mxu0 0.0
    %28 = vmatpush1.msra.mxu0 0.0
    %29 = vmatprep.subr.mxu0 0.0
    %30 = vmatpush1.msra.mxu0 0.0
    %31 = vmatprep.subr.mxu0 0.0
    %32 = vmatpush1.msra.mxu0 0.0
    %33 = vmatprep.subr.mxu0 0.0
    %34 = vmatpush1.msra.mxu0 0.0
    %35 = vmatprep.subr.mxu0 0.0
    %36 = vmatpush1.msra.mxu0 0.0
    %37 = vmatprep.subr.mxu0 0.0
    %38 = vmatpush1.msra.mxu0 0.0
    %39 = vmatprep.subr.mxu0 0.0
    %40 = vmatpush1.msra.mxu0 0.0
    %41 = vmatprep.subr.mxu0 0.0
    %42 = vmatpush1.msra.mxu0 0.0
    %43 = vmatprep.subr.mxu0 0.0
    %44 = vmatpush1.msra.mxu0 0.0
    %45 = vmatprep.subr.mxu0 0.0
    %46 = vmatpush1.msra.mxu0 0.0
    %47 = vmatprep.subr.mxu0 0.0
    %48 = vmatpush1.msra.mxu0 0.0
    %49 = vmatprep.subr.mxu0 0.0
    %50 = vmatpush1.msra.mxu0 0.0
    %51 = vmatprep.subr.mxu0 0.0
    %52 = vmatpush1.msra.mxu0 0.0
    %53 = vmatprep.subr.mxu0 0.0
    %54 = vmatpush1.msra.mxu0 0.0
    %55 = vmatprep.subr.mxu0 0.0
    %56 = vmatpush1.msra.mxu0 0.0
    %57 = vmatprep.subr.mxu0 0.0
    %58 = vmatpush1.msra.mxu0 0.0
    %59 = vmatprep.subr.mxu0 0.0
    %60 = vmatpush1.msra.mxu0 0.0
    %61 = vmatprep.subr.mxu0 0.0
    %62 = vmatpush1.msra.mxu0 0.0
    %63 = vmatprep.subr.mxu0 0.0
    %64 = vmatpush1.msra.mxu0 0.0
    %65 = vmatprep.subr.mxu0 0.0
    %66 = vmatpush1.msra.mxu0 0.0
    %67 = vmatprep.subr.mxu0 0.0
    %68 = vmatpush1.msra.mxu0 0.0
    %69 = vmatprep.subr.mxu0 0.0
    %70 = vmatpush1.msra.mxu0 0.0
    %71 = vmatprep.subr.mxu0 0.0
    %72 = vmatpush1.msra.mxu0 0.0
    %73 = vmatprep.subr.mxu0 0.0
    %74 = vmatpush1.msra.mxu0 0.0
    %75 = vmatprep.subr.mxu0 0.0
    %76 = vmatpush1.msra.mxu0 0.0
    %77 = vmatprep.subr.mxu0 0.0
    %78 = vmatpush1.msra.mxu0 0.0
    %79 = vmatprep.subr.mxu0 0.0
    %80 = vmatpush1.msra.mxu0 0.0
    %81 = vmatprep.subr.mxu0 0.0
    %82 = vmatpush1.msra.mxu0 0.0
    %83 = vmatprep.subr.mxu0 0.0
    %84 = vmatpush1.msra.mxu0 0.0
    %85 = vmatprep.subr.mxu0 0.0
    %86 = vmatpush1.msra.mxu0 0.0
    %87 = vmatprep.mubr.f32.mxu0 0.0
    %88 = vmatmul.mubr.f32.gmra.mrb[0].mxu0 %v17
    %v89 = vpop.f32.mrb[0].mxu0
    %v90 = vadd.f32 0.0, %v89
    %v91 = vpop.f32.mrb[0].mxu0
    %92 = vdwg.mxu0
    %93 = vst.msk [vmem:[#allocation2] sm:$0xff] %vm15, %v90
    // Predicated region
    $region10: #{my_model_forward.1} parent=1 // pred_check
      _
    $region11: #{my_model_forward.1} parent=1 // pred_check_branch
      %95 = sbr.rel (0) target = $region13
    $region12: #{my_model_forward.1} parent=1 // pred_region
      %s97 = ssub.s32 128, 128
      %98 = vsyncadd [#allocation3], %s97
      %s100 = sshll.u32 [#allocation2], 4
      %s101 = int_to_ptr.vmem [resolvable:$true] %s100
      %103 = dma.vmem_to_hbm [thread:$0]  %s101, 128, %s2, [#allocation3]
    $region13: #{my_model_forward.1} parent=1 // pred_fallthru
      _
    // Predicated region
    $region14: #{my_model_forward.1} parent=1 // pred_check
      _
    $region15: #{my_model_forward.1} parent=1 // pred_check_branch
      %105 = sbr.rel (0) target = $region17
    $region16: #{my_model_forward.1} parent=1 // pred_region
      %106 = dma.done [#allocation3], 128
    $region17: #{my_model_forward.1} parent=1 // pred_fallthru
      _
    %107 = vsyncpa [#allocation3], 1

</llo_original>
